<compile_context>
chip_gen: v7x
topology: tpu7x:2x2x1
jax: 0.10.0
libtpu: 0.0.40
codegen_flags: <defaults>
</compile_context>

<pallas_src>
import functools
import math

import jax
import jax.numpy as jnp
from jax.experimental import pallas as pl
from jax.experimental.pallas import tpu as pltpu

NHEAD = 4
LN_EPS = 1e-5


def _round_up(x, m):
    return ((x + m - 1) // m) * m


@functools.lru_cache(maxsize=1)
def _vmem_limit_bytes():
    """Scoped-VMEM cap derived from the local chip (v7x: 64 MiB/TC, v5e/v6e: 128 MiB)."""
    try:
        cap = int(pltpu.get_tpu_info().vmem_capacity_bytes)
    except Exception:
        cap = 64 * 1024 * 1024
    # leave headroom for double-buffered blocks + compiler-internal scratch
    return min((cap * 3) // 4, 100 * 1024 * 1024)


def _pick_block_n(n, cap=512):
    """Destination-row tile. Big tiles amortize per-step overhead; when the whole
    problem would fit one step we still split into >=2 steps so both v7x
    TensorCores get work on the 'parallel' axis."""
    bn = min(cap, _round_up(n, 8))
    if bn >= n and n > 8:
        bn = _round_up(pl.cdiv(n, 2), 8)
    return bn


def _gelu(y):
    # TODO(synk): PyTorch F.gelu defaults to the exact erf GELU; tanh approximation
    # used here because lax.erf is not guaranteed to lower on Mosaic (~1e-3 tails).
    c = 0.7978845608028654  # sqrt(2/pi)
    return 0.5 * y * (1.0 + jnp.tanh(c * (y + 0.044715 * y * y * y)))


# ----------------------------------------------------------------------------
# Single fused kernel: src/dest pre-layers + MHA (tgt_len=1) + residual + LayerNorm
# ----------------------------------------------------------------------------
def fused_gat_layer_kernel(dest, gathered, edges, mask_bias, prm):
    """dest: (N, dest_dim) f32, gathered: (L, N, src_dim) f32,
       edges: (L, N, edge_dim) f32 or None,
       mask_bias: (L, N, 1) f32 additive bias (-1e30 where padded) -> (N, H) f32."""
    N, dest_dim = dest.shape
    L, _, src_dim = gathered.shape
    H = prm['dest_w_t'].shape[1]
    dh = H // NHEAD
    scale = 1.0 / math.sqrt(dh)
    has_edges = edges is not None
    edge_dim = edges.shape[-1] if has_edges else 0

    block_n = _pick_block_n(N)
    N_p = _round_up(N, block_n)
    if N_p != N:
        pad = N_p - N
        dest = jnp.pad(dest, ((0, pad), (0, 0)))
        gathered = jnp.pad(gathered, ((0, 0), (0, pad), (0, 0)))
        mask_bias = jnp.pad(mask_bias, ((0, 0), (0, pad), (0, 0)))
        if has_edges:
            edges = jnp.pad(edges, ((0, 0), (0, pad), (0, 0)))

    # Split the src pre-layer weight so the neighbor/edge concat never hits HBM:
    #   [gathered | edges] @ Wsrc == gathered @ Wsrc[:src_dim] + edges @ Wsrc[src_dim:]
    src_w = prm['src_w_t'].astype(jnp.bfloat16)
    sw_g = src_w[:src_dim]
    sw_e = src_w[src_dim:] if has_edges else None

    # Packed K|V weights (one MXU pass, 64-lane-wide result) and the hoisted
    # block-diagonal same-head pooling matrix (constant input; no per-step iota).
    wkv_t = jnp.concatenate([prm['wk_t'], prm['wv_t']], axis=1).astype(jnp.bfloat16)
    bkv = jnp.concatenate([prm['bk'], prm['bv']], axis=1)
    head = jnp.arange(H, dtype=jnp.int32) // dh
    blockdiag = (head[:, None] == head[None, :]).astype(jnp.float32)   # (H, H)

    def kernel(*refs):
        if has_edges:
            (dest_ref, gat_ref, edg_ref, mb_ref,
             swg_ref, swe_ref, sb_ref, dw_ref, db_ref,
             wq_ref, bq_ref, wkv_ref, bkv_ref, hd_ref,
             wo_ref, bo_ref, g_ref, beta_ref, o_ref) = refs
        else:
            (dest_ref, gat_ref, mb_ref,
             swg_ref, sb_ref, dw_ref, db_ref,
             wq_ref, bq_ref, wkv_ref, bkv_ref, hd_ref,
             wo_ref, bo_ref, g_ref, beta_ref, o_ref) = refs
        bn = dest_ref.shape[0]

        # ---- dest pre-layer + query projection (scaled) ----
        x = jnp.dot(dest_ref[...].astype(jnp.bfloat16), dw_ref[...],
                    preferred_element_type=jnp.float32) + db_ref[...]
        x = _gelu(x)                                                   # (bn, H) f32
        q = jnp.dot(x.astype(jnp.bfloat16), wq_ref[...],
                    preferred_element_type=jnp.float32) + bq_ref[...]
        q = q * scale                                                  # (bn, H)

        # ---- src pre-layer (fused; no (L, N, H) HBM round trip) ----
        g2 = gat_ref[...].reshape(L * bn, src_dim).astype(jnp.bfloat16)
        y = jnp.dot(g2, swg_ref[...], preferred_element_type=jnp.float32)
        if has_edges:
            e2 = edg_ref[...].reshape(L * bn, edge_dim).astype(jnp.bfloat16)
            y = y + jnp.dot(e2, swe_ref[...], preferred_element_type=jnp.float32)
        kv_in = _gelu(y + sb_ref[...])                                 # (L*bn, H) f32

        # ---- K|V projection in one matmul, then static lane split ----
        kvp = jnp.dot(kv_in.astype(jnp.bfloat16), wkv_ref[...],
                      preferred_element_type=jnp.float32) + bkv_ref[...]   # (L*bn, 2H)
        k = kvp[:, :H].reshape(L, bn, H)
        v = kvp[:, H:].reshape(L, bn, H)

        # ---- per-head scores via block-diagonal pooling (MXU, lane-dense) ----
        prod = q[None, :, :] * k                                       # (L, bn, H)
        s = jnp.dot(prod.reshape(L * bn, H), hd_ref[...],
                    preferred_element_type=jnp.float32).reshape(L, bn, H)
        s = s + mb_ref[...]                       # key-padding bias, bcast over H lanes

        # ---- masked softmax over the neighbor axis + aggregation ----
        m = jnp.max(s, axis=0, keepdims=True)
        e = jnp.exp(s - m)                                             # (L, bn, H)
        denom = jnp.sum(e, axis=0)                                     # (bn, H)
        ctx = jnp.sum(e * v, axis=0)                                   # (bn, H)
        attn = ctx * pl.reciprocal(denom, approx=True)

        # ---- output projection + residual-double + LayerNorm ----
        out = jnp.dot(attn.astype(jnp.bfloat16), wo_ref[...],
                      preferred_element_type=jnp.float32) + bo_ref[...]
        # dest_emb + dropout(dest_emb) == 2*out in eval mode; LayerNorm is scale
        # invariant, so LN(2*out, eps) == LN(out, eps/4) -> fold the doubling into eps.
        mu = jnp.mean(out, axis=-1, keepdims=True)
        var = jnp.mean((out - mu) * (out - mu), axis=-1, keepdims=True)
        o_ref[...] = (out - mu) * jax.lax.rsqrt(var + LN_EPS * 0.25) * g_ref[...] + beta_ref[...]

    data_args = [dest, gathered] + ([edges] if has_edges else []) + [mask_bias]
    const_args = [sw_g]
    if has_edges:
        const_args.append(sw_e)
    const_args += [prm['src_b'],
                   prm['dest_w_t'].astype(jnp.bfloat16), prm['dest_b'],
                   prm['wq_t'].astype(jnp.bfloat16), prm['bq'],
                   wkv_t, bkv, blockdiag,
                   prm['wo_t'].astype(jnp.bfloat16), prm['bo'],
                   prm['ln_g'], prm['ln_b']]

    data_specs = [pl.BlockSpec((block_n, dest_dim), lambda i: (i, 0)),
                  pl.BlockSpec((L, block_n, src_dim), lambda i: (0, i, 0))]
    if has_edges:
        data_specs.append(pl.BlockSpec((L, block_n, edge_dim), lambda i: (0, i, 0)))
    data_specs.append(pl.BlockSpec((L, block_n, 1), lambda i: (0, i, 0)))

    def const_spec(a):
        nd = a.ndim
        return pl.BlockSpec(tuple(a.shape), lambda i: (0,) * nd)

    in_specs = data_specs + [const_spec(a) for a in const_args]

    flops = int(2 * N_p * H * (dest_dim + 2 * H)
                + 2 * L * N_p * H * (src_dim + edge_dim + 3 * H))
    transc = int(2 * N_p * H + 2 * L * N_p * H)
    bytes_acc = int(4 * (N_p * dest_dim + L * N_p * (src_dim + edge_dim + 1) + N_p * H)
                    + 2 * ((src_dim + edge_dim + dest_dim) * H + 5 * H * H)
                    + 4 * (H * H + 8 * H))
    cost = pl.CostEstimate(flops=flops, transcendentals=transc, bytes_accessed=bytes_acc)

    out = pl.pallas_call(
        kernel,
        out_shape=jax.ShapeDtypeStruct((N_p, H), jnp.float32),
        grid=(N_p // block_n,),
        in_specs=in_specs,
        out_specs=pl.BlockSpec((block_n, H), lambda i: (i, 0)),
        compiler_params=pltpu.CompilerParams(
            dimension_semantics=("parallel",),
            vmem_limit_bytes=_vmem_limit_bytes()),
        cost_estimate=cost,
    )(*(data_args + const_args))
    return out[:N]


# ----------------------------------------------------------------------------
# SimpleGATLayer forward (gather in JAX + one fused Pallas kernel)
# ----------------------------------------------------------------------------
def simple_gat_layer(prm, src, dest, adj, mask, edges=None):
    """src: (B, s_cnt, src_dim), dest: (B, d_cnt, dest_dim),
       adj: (L, B*d_cnt) int32 (0 = padding; i>0 -> src row i-1),
       mask: (B*d_cnt, L) bool (True = padded),
       edges: (L, B*d_cnt, edge_dim) or None."""
    batch, s_cnt, src_dim = src.shape
    _, d_cnt, dest_dim = dest.shape
    L = adj.shape[0]
    N = batch * d_cnt
    hidden = prm['dest_w_t'].shape[1]

    # TODO(synk): data-dependent adjacency gather kept in plain JAX; fusing it would
    # need a manual DMA gather (pl.ANY + make_async_copy per row) inside the kernel.
    src_flat = src.reshape(-1, src_dim)
    table = jnp.concatenate([jnp.zeros((1, src_dim), src.dtype), src_flat], axis=0)
    gathered = jnp.take(table, adj.reshape(-1), axis=0).reshape(L, N, src_dim)

    # Narrow (L, N, 1) additive key-padding bias; head/H broadcast happens in-kernel.
    mask_bias = jnp.where(mask, jnp.float32(-1e30), jnp.float32(0.0)).T[:, :, None]

    out = fused_gat_layer_kernel(dest.reshape(N, dest_dim), gathered, edges, mask_bias, prm)
    return out.reshape(batch, d_cnt, hidden)


# ----------------------------------------------------------------------------
# SimpleTransformer forward
# ----------------------------------------------------------------------------
def simple_transformer_forward(params, p, pe, v, ve, ppe, layer_num=2):
    pp = p
    pre_p, pre_v, pre_pp = p, v, pp
    for i in range(layer_num):
        p_new = simple_gat_layer(params['p'][i], pre_v, pre_p, pe['adj'], pe['mask'],
                                 edges=pe['edge'] if i == 0 else None)
        if i != layer_num - 1:
            v_new = simple_gat_layer(params['v'][i], pre_p, pre_v, ve['adj'], ve['mask'],
                                     edges=ve['edge'] if i == 0 else None)
        else:
            v_new = pre_v
        pp_new = simple_gat_layer(params['pp'][i], pre_pp, pre_pp, ppe['adj'], ppe['mask'],
                                  edges=ppe['edge'] if i == 0 else None)
        pre_p, pre_v, pre_pp = p_new, v_new, pp_new
    p_out = jnp.concatenate([pre_p, pre_pp], axis=2)
    return p_out, pre_v


# ----------------------------------------------------------------------------
# Deterministic parameter init (shapes follow the PyTorch module __init__)
# ----------------------------------------------------------------------------
def init_gat_params(key, src_dim, dest_dim, edge_dim, hidden):
    ks = jax.random.split(key, 12)

    def w(k, din, dout):  # stored already transposed: (din, dout)
        return jax.random.normal(k, (din, dout), jnp.float32) / math.sqrt(din)

    def b(k, dout):
        return jax.random.normal(k, (1, dout), jnp.float32) * 0.01

    return dict(
        src_w_t=w(ks[0], src_dim + edge_dim, hidden), src_b=b(ks[1], hidden),
        dest_w_t=w(ks[2], dest_dim, hidden), dest_b=b(ks[3], hidden),
        wq_t=w(ks[4], hidden, hidden), wk_t=w(ks[5], hidden, hidden),
        wv_t=w(ks[6], hidden, hidden),
        bq=b(ks[7], hidden), bk=b(ks[8], hidden), bv=b(ks[9], hidden),
        wo_t=w(ks[10], hidden, hidden), bo=b(ks[11], hidden),
        ln_g=jnp.ones((1, hidden), jnp.float32),
        ln_b=jnp.zeros((1, hidden), jnp.float32),
    )


if __name__ == "__main__":
    key = jax.random.PRNGKey(0)
    batch, p_cnt, v_cnt = 2, 4, 4
    p_dim, v_dim = 8, 6
    edge_dim = {'v': 4, 'p': 3}
    hidden = 32
    layer_num = 2
    L_pe, L_ve, L_ppe = 5, 6, 4
    N_p, N_v = batch * p_cnt, batch * v_cnt

    keys = jax.random.split(key, 12)
    p = jax.random.normal(keys[0], (batch, p_cnt, p_dim), jnp.float32)
    v = jax.random.normal(keys[1], (batch, v_cnt, v_dim), jnp.float32)

    def make_edge_set(kadj, kmask, kedge, L, n_dest, n_src, e_dim):
        adj = jax.random.randint(kadj, (L, n_dest), 1, n_src + 1).astype(jnp.int32)
        mask = jax.random.uniform(kmask, (n_dest, L)) < 0.3
        mask = mask.at[:, 0].set(False)            # never fully masked
        adj = jnp.where(mask.T, 0, adj)            # padded positions point at zero row
        edge = jax.random.normal(kedge, (L, n_dest, e_dim), jnp.float32)
        return {'adj': adj, 'mask': mask, 'edge': edge}

    pe = make_edge_set(keys[2], keys[3], keys[4], L_pe, N_p, batch * v_cnt, edge_dim['v'])
    ve = make_edge_set(keys[5], keys[6], keys[7], L_ve, N_v, batch * p_cnt, edge_dim['v'])
    ppe = make_edge_set(keys[8], keys[9], keys[10], L_ppe, N_p, batch * p_cnt, edge_dim['p'])

    pkeys = jax.random.split(keys[11], 5)
    params = {
        'p': [init_gat_params(pkeys[0], v_dim, p_dim, edge_dim['v'], hidden),
              init_gat_params(pkeys[1], hidden, hidden, 0, hidden)],
        'v': [init_gat_params(pkeys[2], p_dim, v_dim, edge_dim['v'], hidden)],
        'pp': [init_gat_params(pkeys[3], p_dim, p_dim, edge_dim['p'], hidden),
               init_gat_params(pkeys[4], hidden, hidden, 0, hidden)],
    }

    p_out, v_out = simple_transformer_forward(params, p, pe, v, ve, ppe, layer_num=layer_num)
    jax.block_until_ready((p_out, v_out))
    assert p_out.shape == (batch, p_cnt, 2 * hidden), p_out.shape
    assert v_out.shape == (batch, v_cnt, hidden), v_out.shape
    assert bool(jnp.all(jnp.isfinite(p_out))) and bool(jnp.all(jnp.isfinite(v_out)))
    print("KERNEL_OK")
</pallas_src>

<mosaic_0001>
module attributes {stable_mosaic.version = 11 : i64} {
  func.func @kernel(%arg0: i32, %arg1: memref<8x8xf32, #tpu.memory_space<vmem>>, %arg2: memref<5x8x6xf32, #tpu.memory_space<vmem>>, %arg3: memref<5x8x4xf32, #tpu.memory_space<vmem>>, %arg4: memref<5x8x1xf32, #tpu.memory_space<vmem>>, %arg5: memref<6x32xbf16, #tpu.memory_space<vmem>>, %arg6: memref<4x32xbf16, #tpu.memory_space<vmem>>, %arg7: memref<1x32xf32, #tpu.memory_space<vmem>>, %arg8: memref<8x32xbf16, #tpu.memory_space<vmem>>, %arg9: memref<1x32xf32, #tpu.memory_space<vmem>>, %arg10: memref<32x32xbf16, #tpu.memory_space<vmem>>, %arg11: memref<1x32xf32, #tpu.memory_space<vmem>>, %arg12: memref<32x64xbf16, #tpu.memory_space<vmem>>, %arg13: memref<1x64xf32, #tpu.memory_space<vmem>>, %arg14: memref<32x32xf32, #tpu.memory_space<vmem>>, %arg15: memref<32x32xbf16, #tpu.memory_space<vmem>>, %arg16: memref<1x32xf32, #tpu.memory_space<vmem>>, %arg17: memref<1x32xf32, #tpu.memory_space<vmem>>, %arg18: memref<1x32xf32, #tpu.memory_space<vmem>>, %arg19: memref<8x32xf32, #tpu.memory_space<vmem>>) attributes {dimension_semantics = [#tpu.dimension_semantics<parallel>], iteration_bounds = array<i64: 1>, scalar_prefetch = 0 : i64, scratch_operands = 0 : i64, tpu.core_type = #tpu.core_type<tc>, window_params = [{transform_indices = @transform_0, window_bounds = array<i64: 8, 8>}, {transform_indices = @transform_1, window_bounds = array<i64: 5, 8, 6>}, {transform_indices = @transform_2, window_bounds = array<i64: 5, 8, 4>}, {transform_indices = @transform_3, window_bounds = array<i64: 5, 8, 1>}, {pipeline_mode = #tpu.pipeline_mode<synchronous>, transform_indices = @transform_4, window_bounds = array<i64: 6, 32>}, {pipeline_mode = #tpu.pipeline_mode<synchronous>, transform_indices = @transform_5, window_bounds = array<i64: 4, 32>}, {pipeline_mode = #tpu.pipeline_mode<synchronous>, transform_indices = @transform_6, window_bounds = array<i64: 1, 32>}, {pipeline_mode = #tpu.pipeline_mode<synchronous>, transform_indices = @transform_7, window_bounds = array<i64: 8, 32>}, {pipeline_mode = #tpu.pipeline_mode<synchronous>, transform_indices = @transform_8, window_bounds = array<i64: 1, 32>}, {pipeline_mode = #tpu.pipeline_mode<synchronous>, transform_indices = @transform_9, window_bounds = array<i64: 32, 32>}, {pipeline_mode = #tpu.pipeline_mode<synchronous>, transform_indices = @transform_10, window_bounds = array<i64: 1, 32>}, {pipeline_mode = #tpu.pipeline_mode<synchronous>, transform_indices = @transform_11, window_bounds = array<i64: 32, 64>}, {pipeline_mode = #tpu.pipeline_mode<synchronous>, transform_indices = @transform_12, window_bounds = array<i64: 1, 64>}, {pipeline_mode = #tpu.pipeline_mode<synchronous>, transform_indices = @transform_13, window_bounds = array<i64: 32, 32>}, {pipeline_mode = #tpu.pipeline_mode<synchronous>, transform_indices = @transform_14, window_bounds = array<i64: 32, 32>}, {pipeline_mode = #tpu.pipeline_mode<synchronous>, transform_indices = @transform_15, window_bounds = array<i64: 1, 32>}, {pipeline_mode = #tpu.pipeline_mode<synchronous>, transform_indices = @transform_16, window_bounds = array<i64: 1, 32>}, {pipeline_mode = #tpu.pipeline_mode<synchronous>, transform_indices = @transform_17, window_bounds = array<i64: 1, 32>}, {transform_indices = @transform_18, window_bounds = array<i64: 8, 32>}]} {
    %c0 = arith.constant 0 : index
    %c0_0 = arith.constant 0 : index
    %0 = vector.load %arg1[%c0, %c0_0] : memref<8x8xf32, #tpu.memory_space<vmem>>, vector<8x8xf32>
    %1 = arith.truncf %0 : vector<8x8xf32> to vector<8x8xbf16>
    %c0_1 = arith.constant 0 : index
    %c0_2 = arith.constant 0 : index
    %2 = vector.load %arg8[%c0_1, %c0_2] : memref<8x32xbf16, #tpu.memory_space<vmem>>, vector<8x32xbf16>
    %cst = arith.constant dense<0.000000e+00> : vector<8x32xf32>
    %3 = tpu.matmul %1, %2, %cst {dimension_numbers = #tpu.dot_dimension_numbers<[1], [0], [0], [1], [0, 0, 1, 1], [], []>} : vector<8x8xbf16>, vector<8x32xbf16>, vector<8x32xf32> -> vector<8x32xf32>
    %c0_3 = arith.constant 0 : index
    %c0_4 = arith.constant 0 : index
    %4 = vector.load %arg9[%c0_3, %c0_4] : memref<1x32xf32, #tpu.memory_space<vmem>>, vector<1x32xf32>
    %5 = vector.broadcast %4 : vector<1x32xf32> to vector<8x32xf32>
    %6 = arith.addf %3, %5 : vector<8x32xf32>
    %cst_5 = arith.constant 5.000000e-01 : f32
    %7 = vector.broadcast %cst_5 : f32 to vector<8x32xf32>
    %8 = arith.mulf %7, %6 : vector<8x32xf32>
    %cst_6 = arith.constant 4.471500e-02 : f32
    %9 = vector.broadcast %cst_6 : f32 to vector<8x32xf32>
    %10 = arith.mulf %9, %6 : vector<8x32xf32>
    %11 = arith.mulf %10, %6 : vector<8x32xf32>
    %12 = arith.mulf %11, %6 : vector<8x32xf32>
    %13 = arith.addf %6, %12 : vector<8x32xf32>
    %cst_7 = arith.constant 0.797884583 : f32
    %14 = vector.broadcast %cst_7 : f32 to vector<8x32xf32>
    %15 = arith.mulf %14, %13 : vector<8x32xf32>
    %16 = math.tanh %15 : vector<8x32xf32>
    %cst_8 = arith.constant 1.000000e+00 : f32
    %17 = vector.broadcast %cst_8 : f32 to vector<8x32xf32>
    %18 = arith.addf %17, %16 : vector<8x32xf32>
    %19 = arith.mulf %8, %18 : vector<8x32xf32>
    %20 = arith.truncf %19 : vector<8x32xf32> to vector<8x32xbf16>
    %c0_9 = arith.constant 0 : index
    %c0_10 = arith.constant 0 : index
    %21 = vector.load %arg10[%c0_9, %c0_10] : memref<32x32xbf16, #tpu.memory_space<vmem>>, vector<32x32xbf16>
    %cst_11 = arith.constant dense<0.000000e+00> : vector<8x32xf32>
    %22 = tpu.matmul %20, %21, %cst_11 {dimension_numbers = #tpu.dot_dimension_numbers<[1], [0], [0], [1], [0, 0, 1, 1], [], []>} : vector<8x32xbf16>, vector<32x32xbf16>, vector<8x32xf32> -> vector<8x32xf32>
    %c0_12 = arith.constant 0 : index
    %c0_13 = arith.constant 0 : index
    %23 = vector.load %arg11[%c0_12, %c0_13] : memref<1x32xf32, #tpu.memory_space<vmem>>, vector<1x32xf32>
    %24 = vector.broadcast %23 : vector<1x32xf32> to vector<8x32xf32>
    %25 = arith.addf %22, %24 : vector<8x32xf32>
    %cst_14 = arith.constant 0.353553385 : f32
    %26 = vector.broadcast %cst_14 : f32 to vector<8x32xf32>
    %27 = arith.mulf %25, %26 : vector<8x32xf32>
    %c0_15 = arith.constant 0 : index
    %c0_16 = arith.constant 0 : index
    %c0_17 = arith.constant 0 : index
    %28 = vector.load %arg2[%c0_15, %c0_16, %c0_17] : memref<5x8x6xf32, #tpu.memory_space<vmem>>, vector<5x8x6xf32>
    %29 = vector.shape_cast %28 : vector<5x8x6xf32> to vector<40x6xf32>
    %30 = arith.truncf %29 : vector<40x6xf32> to vector<40x6xbf16>
    %c0_18 = arith.constant 0 : index
    %c0_19 = arith.constant 0 : index
    %31 = vector.load %arg5[%c0_18, %c0_19] : memref<6x32xbf16, #tpu.memory_space<vmem>>, vector<6x32xbf16>
    %cst_20 = arith.constant dense<0.000000e+00> : vector<40x32xf32>
    %32 = tpu.matmul %30, %31, %cst_20 {dimension_numbers = #tpu.dot_dimension_numbers<[1], [0], [0], [1], [0, 0, 1, 1], [], []>} : vector<40x6xbf16>, vector<6x32xbf16>, vector<40x32xf32> -> vector<40x32xf32>
    %c0_21 = arith.constant 0 : index
    %c0_22 = arith.constant 0 : index
    %c0_23 = arith.constant 0 : index
    %33 = vector.load %arg3[%c0_21, %c0_22, %c0_23] : memref<5x8x4xf32, #tpu.memory_space<vmem>>, vector<5x8x4xf32>
    %34 = vector.shape_cast %33 : vector<5x8x4xf32> to vector<40x4xf32>
    %35 = arith.truncf %34 : vector<40x4xf32> to vector<40x4xbf16>
    %c0_24 = arith.constant 0 : index
    %c0_25 = arith.constant 0 : index
    %36 = vector.load %arg6[%c0_24, %c0_25] : memref<4x32xbf16, #tpu.memory_space<vmem>>, vector<4x32xbf16>
    %cst_26 = arith.constant dense<0.000000e+00> : vector<40x32xf32>
    %37 = tpu.matmul %35, %36, %cst_26 {dimension_numbers = #tpu.dot_dimension_numbers<[1], [0], [0], [1], [0, 0, 1, 1], [], []>} : vector<40x4xbf16>, vector<4x32xbf16>, vector<40x32xf32> -> vector<40x32xf32>
    %38 = arith.addf %32, %37 : vector<40x32xf32>
    %c0_27 = arith.constant 0 : index
    %c0_28 = arith.constant 0 : index
    %39 = vector.load %arg7[%c0_27, %c0_28] : memref<1x32xf32, #tpu.memory_space<vmem>>, vector<1x32xf32>
    %40 = vector.broadcast %39 : vector<1x32xf32> to vector<40x32xf32>
    %41 = arith.addf %38, %40 : vector<40x32xf32>
    %cst_29 = arith.constant 5.000000e-01 : f32
    %42 = vector.broadcast %cst_29 : f32 to vector<40x32xf32>
    %43 = arith.mulf %42, %41 : vector<40x32xf32>
    %cst_30 = arith.constant 4.471500e-02 : f32
    %44 = vector.broadcast %cst_30 : f32 to vector<40x32xf32>
    %45 = arith.mulf %44, %41 : vector<40x32xf32>
    %46 = arith.mulf %45, %41 : vector<40x32xf32>
    %47 = arith.mulf %46, %41 : vector<40x32xf32>
    %48 = arith.addf %41, %47 : vector<40x32xf32>
    %cst_31 = arith.constant 0.797884583 : f32
    %49 = vector.broadcast %cst_31 : f32 to vector<40x32xf32>
    %50 = arith.mulf %49, %48 : vector<40x32xf32>
    %51 = math.tanh %50 : vector<40x32xf32>
    %cst_32 = arith.constant 1.000000e+00 : f32
    %52 = vector.broadcast %cst_32 : f32 to vector<40x32xf32>
    %53 = arith.addf %52, %51 : vector<40x32xf32>
    %54 = arith.mulf %43, %53 : vector<40x32xf32>
    %55 = arith.truncf %54 : vector<40x32xf32> to vector<40x32xbf16>
    %c0_33 = arith.constant 0 : index
    %c0_34 = arith.constant 0 : index
    %56 = vector.load %arg12[%c0_33, %c0_34] : memref<32x64xbf16, #tpu.memory_space<vmem>>, vector<32x64xbf16>
    %cst_35 = arith.constant dense<0.000000e+00> : vector<40x64xf32>
    %57 = tpu.matmul %55, %56, %cst_35 {dimension_numbers = #tpu.dot_dimension_numbers<[1], [0], [0], [1], [0, 0, 1, 1], [], []>} : vector<40x32xbf16>, vector<32x64xbf16>, vector<40x64xf32> -> vector<40x64xf32>
    %c0_36 = arith.constant 0 : index
    %c0_37 = arith.constant 0 : index
    %58 = vector.load %arg13[%c0_36, %c0_37] : memref<1x64xf32, #tpu.memory_space<vmem>>, vector<1x64xf32>
    %59 = vector.broadcast %58 : vector<1x64xf32> to vector<40x64xf32>
    %60 = arith.addf %57, %59 : vector<40x64xf32>
    %61 = vector.extract_strided_slice %60 {offsets = [0, 0], sizes = [40, 32], strides = [1, 1]} : vector<40x64xf32> to vector<40x32xf32>
    %62 = vector.shape_cast %61 : vector<40x32xf32> to vector<5x8x32xf32>
    %63 = vector.extract_strided_slice %60 {offsets = [0, 32], sizes = [40, 32], strides = [1, 1]} : vector<40x64xf32> to vector<40x32xf32>
    %64 = vector.shape_cast %63 : vector<40x32xf32> to vector<5x8x32xf32>
    %65 = vector.shape_cast %27 : vector<8x32xf32> to vector<1x8x32xf32>
    %66 = vector.broadcast %65 : vector<1x8x32xf32> to vector<5x8x32xf32>
    %67 = arith.mulf %66, %62 : vector<5x8x32xf32>
    %68 = vector.shape_cast %67 : vector<5x8x32xf32> to vector<40x32xf32>
    %c0_38 = arith.constant 0 : index
    %c0_39 = arith.constant 0 : index
    %69 = vector.load %arg14[%c0_38, %c0_39] : memref<32x32xf32, #tpu.memory_space<vmem>>, vector<32x32xf32>
    %cst_40 = arith.constant dense<0.000000e+00> : vector<40x32xf32>
    %70 = tpu.matmul %68, %69, %cst_40 {dimension_numbers = #tpu.dot_dimension_numbers<[1], [0], [0], [1], [0, 0, 1, 1], [], []>} : vector<40x32xf32>, vector<32x32xf32>, vector<40x32xf32> -> vector<40x32xf32>
    %71 = vector.shape_cast %70 : vector<40x32xf32> to vector<5x8x32xf32>
    %c0_41 = arith.constant 0 : index
    %c0_42 = arith.constant 0 : index
    %c0_43 = arith.constant 0 : index
    %72 = vector.load %arg4[%c0_41, %c0_42, %c0_43] : memref<5x8x1xf32, #tpu.memory_space<vmem>>, vector<5x8x1xf32>
    %73 = vector.broadcast %72 : vector<5x8x1xf32> to vector<5x8x32xf32>
    %74 = arith.addf %71, %73 : vector<5x8x32xf32>
    %cst_44 = arith.constant dense<0xFF800000> : vector<8x32xf32>
    %75 = vector.multi_reduction <maximumf>, %74, %cst_44 [0] : vector<5x8x32xf32> to vector<8x32xf32>
    %76 = vector.shape_cast %75 : vector<8x32xf32> to vector<1x8x32xf32>
    %77 = vector.broadcast %76 : vector<1x8x32xf32> to vector<5x8x32xf32>
    %78 = arith.subf %74, %77 : vector<5x8x32xf32>
    %79 = math.exp %78 : vector<5x8x32xf32>
    %cst_45 = arith.constant dense<0.000000e+00> : vector<8x32xf32>
    %80 = vector.multi_reduction <add>, %79, %cst_45 [0] : vector<5x8x32xf32> to vector<8x32xf32>
    %81 = arith.mulf %79, %64 : vector<5x8x32xf32>
    %cst_46 = arith.constant dense<0.000000e+00> : vector<8x32xf32>
    %82 = vector.multi_reduction <add>, %81, %cst_46 [0] : vector<5x8x32xf32> to vector<8x32xf32>
    %83 = tpu.reciprocal %80 {approx = true} : vector<8x32xf32> -> vector<8x32xf32>
    %84 = arith.mulf %82, %83 : vector<8x32xf32>
    %85 = arith.truncf %84 : vector<8x32xf32> to vector<8x32xbf16>
    %c0_47 = arith.constant 0 : index
    %c0_48 = arith.constant 0 : index
    %86 = vector.load %arg15[%c0_47, %c0_48] : memref<32x32xbf16, #tpu.memory_space<vmem>>, vector<32x32xbf16>
    %cst_49 = arith.constant dense<0.000000e+00> : vector<8x32xf32>
    %87 = tpu.matmul %85, %86, %cst_49 {dimension_numbers = #tpu.dot_dimension_numbers<[1], [0], [0], [1], [0, 0, 1, 1], [], []>} : vector<8x32xbf16>, vector<32x32xbf16>, vector<8x32xf32> -> vector<8x32xf32>
    %c0_50 = arith.constant 0 : index
    %c0_51 = arith.constant 0 : index
    %88 = vector.load %arg16[%c0_50, %c0_51] : memref<1x32xf32, #tpu.memory_space<vmem>>, vector<1x32xf32>
    %89 = vector.broadcast %88 : vector<1x32xf32> to vector<8x32xf32>
    %90 = arith.addf %87, %89 : vector<8x32xf32>
    %cst_52 = arith.constant dense<0.000000e+00> : vector<8xf32>
    %91 = vector.multi_reduction <add>, %90, %cst_52 [1] : vector<8x32xf32> to vector<8xf32>
    %92 = vector.shape_cast %91 : vector<8xf32> to vector<8x1xf32>
    %cst_53 = arith.constant 3.200000e+01 : f32
    %93 = vector.broadcast %cst_53 : f32 to vector<8x1xf32>
    %94 = arith.divf %92, %93 : vector<8x1xf32>
    %95 = vector.broadcast %94 : vector<8x1xf32> to vector<8x32xf32>
    %96 = arith.subf %90, %95 : vector<8x32xf32>
    %97 = vector.broadcast %94 : vector<8x1xf32> to vector<8x32xf32>
    %98 = arith.subf %90, %97 : vector<8x32xf32>
    %99 = arith.mulf %96, %98 : vector<8x32xf32>
    %cst_54 = arith.constant dense<0.000000e+00> : vector<8xf32>
    %100 = vector.multi_reduction <add>, %99, %cst_54 [1] : vector<8x32xf32> to vector<8xf32>
    %101 = vector.shape_cast %100 : vector<8xf32> to vector<8x1xf32>
    %cst_55 = arith.constant 3.200000e+01 : f32
    %102 = vector.broadcast %cst_55 : f32 to vector<8x1xf32>
    %103 = arith.divf %101, %102 : vector<8x1xf32>
    %104 = vector.broadcast %94 : vector<8x1xf32> to vector<8x32xf32>
    %105 = arith.subf %90, %104 : vector<8x32xf32>
    %cst_56 = arith.constant 2.500000e-06 : f32
    %106 = vector.broadcast %cst_56 : f32 to vector<8x1xf32>
    %107 = arith.addf %103, %106 : vector<8x1xf32>
    %108 = math.rsqrt %107 : vector<8x1xf32>
    %109 = vector.broadcast %108 : vector<8x1xf32> to vector<8x32xf32>
    %110 = arith.mulf %105, %109 : vector<8x32xf32>
    %c0_57 = arith.constant 0 : index
    %c0_58 = arith.constant 0 : index
    %111 = vector.load %arg17[%c0_57, %c0_58] : memref<1x32xf32, #tpu.memory_space<vmem>>, vector<1x32xf32>
    %112 = vector.broadcast %111 : vector<1x32xf32> to vector<8x32xf32>
    %113 = arith.mulf %110, %112 : vector<8x32xf32>
    %c0_59 = arith.constant 0 : index
    %c0_60 = arith.constant 0 : index
    %114 = vector.load %arg18[%c0_59, %c0_60] : memref<1x32xf32, #tpu.memory_space<vmem>>, vector<1x32xf32>
    %115 = vector.broadcast %114 : vector<1x32xf32> to vector<8x32xf32>
    %116 = arith.addf %113, %115 : vector<8x32xf32>
    %c0_61 = arith.constant 0 : index
    %c0_62 = arith.constant 0 : index
    %117 = vector.load %arg19[%c0_61, %c0_62] : memref<8x32xf32, #tpu.memory_space<vmem>>, vector<8x32xf32>
    tpu.vector_store %arg19[%c0_61, %c0_62], %116 {strides = array<i32>} : memref<8x32xf32, #tpu.memory_space<vmem>>, vector<8x32xf32>,
    return
  }
  func.func @transform_0(%arg0: i32) -> (i32, i32) {
    %c0_i32 = arith.constant 0 : i32
    %c0_i32_0 = arith.constant 0 : i32
    return %arg0, %c0_i32 : i32, i32
  }
  func.func @transform_1(%arg0: i32) -> (i32, i32, i32) {
    %c0_i32 = arith.constant 0 : i32
    %c0_i32_0 = arith.constant 0 : i32
    %c0_i32_1 = arith.constant 0 : i32
    return %c0_i32, %arg0, %c0_i32_0 : i32, i32, i32
  }
  func.func @transform_2(%arg0: i32) -> (i32, i32, i32) {
    %c0_i32 = arith.constant 0 : i32
    %c0_i32_0 = arith.constant 0 : i32
    %c0_i32_1 = arith.constant 0 : i32
    return %c0_i32, %arg0, %c0_i32_0 : i32, i32, i32
  }
  func.func @transform_3(%arg0: i32) -> (i32, i32, i32) {
    %c0_i32 = arith.constant 0 : i32
    %c0_i32_0 = arith.constant 0 : i32
    %c0_i32_1 = arith.constant 0 : i32
    return %c0_i32, %arg0, %c0_i32_0 : i32, i32, i32
  }
  func.func @transform_4(%arg0: i32) -> (i32, i32) {
    %c0_i32 = arith.constant 0 : i32
    %c0_i32_0 = arith.constant 0 : i32
    %c0_i32_1 = arith.constant 0 : i32
    return %c0_i32, %c0_i32_0 : i32, i32
  }
  func.func @transform_5(%arg0: i32) -> (i32, i32) {
    %c0_i32 = arith.constant 0 : i32
    %c0_i32_0 = arith.constant 0 : i32
    %c0_i32_1 = arith.constant 0 : i32
    return %c0_i32, %c0_i32_0 : i32, i32
  }
  func.func @transform_6(%arg0: i32) -> (i32, i32) {
    %c0_i32 = arith.constant 0 : i32
    %c0_i32_0 = arith.constant 0 : i32
    %c0_i32_1 = arith.constant 0 : i32
    return %c0_i32, %c0_i32_0 : i32, i32
  }
  func.func @transform_7(%arg0: i32) -> (i32, i32) {
    %c0_i32 = arith.constant 0 : i32
    %c0_i32_0 = arith.constant 0 : i32
    %c0_i32_1 = arith.constant 0 : i32
    return %c0_i32, %c0_i32_0 : i32, i32
  }
  func.func @transform_8(%arg0: i32) -> (i32, i32) {
    %c0_i32 = arith.constant 0 : i32
    %c0_i32_0 = arith.constant 0 : i32
    %c0_i32_1 = arith.constant 0 : i32
    return %c0_i32, %c0_i32_0 : i32, i32
  }
  func.func @transform_9(%arg0: i32) -> (i32, i32) {
    %c0_i32 = arith.constant 0 : i32
    %c0_i32_0 = arith.constant 0 : i32
    %c0_i32_1 = arith.constant 0 : i32
    return %c0_i32, %c0_i32_0 : i32, i32
  }
  func.func @transform_10(%arg0: i32) -> (i32, i32) {
    %c0_i32 = arith.constant 0 : i32
    %c0_i32_0 = arith.constant 0 : i32
    %c0_i32_1 = arith.constant 0 : i32
    return %c0_i32, %c0_i32_0 : i32, i32
  }
  func.func @transform_11(%arg0: i32) -> (i32, i32) {
    %c0_i32 = arith.constant 0 : i32
    %c0_i32_0 = arith.constant 0 : i32
    %c0_i32_1 = arith.constant 0 : i32
    return %c0_i32, %c0_i32_0 : i32, i32
  }
  func.func @transform_12(%arg0: i32) -> (i32, i32) {
    %c0_i32 = arith.constant 0 : i32
    %c0_i32_0 = arith.constant 0 : i32
    %c0_i32_1 = arith.constant 0 : i32
    return %c0_i32, %c0_i32_0 : i32, i32
  }
  func.func @transform_13(%arg0: i32) -> (i32, i32) {
    %c0_i32 = arith.constant 0 : i32
    %c0_i32_0 = arith.constant 0 : i32
    %c0_i32_1 = arith.constant 0 : i32
    return %c0_i32, %c0_i32_0 : i32, i32
  }
  func.func @transform_14(%arg0: i32) -> (i32, i32) {
    %c0_i32 = arith.constant 0 : i32
    %c0_i32_0 = arith.constant 0 : i32
    %c0_i32_1 = arith.constant 0 : i32
    return %c0_i32, %c0_i32_0 : i32, i32
  }
  func.func @transform_15(%arg0: i32) -> (i32, i32) {
    %c0_i32 = arith.constant 0 : i32
    %c0_i32_0 = arith.constant 0 : i32
    %c0_i32_1 = arith.constant 0 : i32
    return %c0_i32, %c0_i32_0 : i32, i32
  }
  func.func @transform_16(%arg0: i32) -> (i32, i32) {
    %c0_i32 = arith.constant 0 : i32
    %c0_i32_0 = arith.constant 0 : i32
    %c0_i32_1 = arith.constant 0 : i32
    return %c0_i32, %c0_i32_0 : i32, i32
  }
  func.func @transform_17(%arg0: i32) -> (i32, i32) {
    %c0_i32 = arith.constant 0 : i32
    %c0_i32_0 = arith.constant 0 : i32
    %c0_i32_1 = arith.constant 0 : i32
    return %c0_i32, %c0_i32_0 : i32, i32
  }
  func.func @transform_18(%arg0: i32) -> (i32, i32) {
    %c0_i32 = arith.constant 0 : i32
    %c0_i32_0 = arith.constant 0 : i32
    return %arg0, %c0_i32 : i32, i32
  }
}

</mosaic_0001>

<llo_original>
// kernel: tpu_custom_call.1
$region0: #{tpu_custom_call.1}
  #allocation0 [shape = 'u32[]', space=smem, size = 0x4, offset = 0x4, fixed_abs, tag = 'smem constant byte address 0x4 - core index']
  #allocation1 [shape = 'u32[144,128]{1,0:T(1,128)}', space=vmem, size = 0x12000, scoped, tag = 'internal scratch']
  %s0 = inlined_call_operand.hbm [shape: f32[8,8], index: 0, kind: input, shape index: {}]
  %s1 = inlined_call_operand.vmem [shape: f32[5,8,6], index: 1, kind: input, shape index: {}]
  %s2 = inlined_call_operand.vmem [shape: f32[5,8,4], index: 2, kind: input, shape index: {}]
  %s3 = inlined_call_operand.vmem [shape: f32[5,8,1], index: 3, kind: input, shape index: {}]
  %s4 = inlined_call_operand.hbm [shape: bf16[6,32], index: 4, kind: input, shape index: {}]
  %s5 = inlined_call_operand.vmem [shape: bf16[4,32], index: 5, kind: input, shape index: {}]
  %s6 = inlined_call_operand.vmem [shape: f32[1,32], index: 6, kind: input, shape index: {}]
  %s7 = inlined_call_operand.vmem [shape: bf16[8,32], index: 7, kind: input, shape index: {}]
  %s8 = inlined_call_operand.vmem [shape: f32[1,32], index: 8, kind: input, shape index: {}]
  %s9 = inlined_call_operand.vmem [shape: bf16[32,32], index: 9, kind: input, shape index: {}]
  %s10 = inlined_call_operand.vmem [shape: f32[1,32], index: 10, kind: input, shape index: {}]
  %s11 = inlined_call_operand.vmem [shape: bf16[32,64], index: 11, kind: input, shape index: {}]
  %s12 = inlined_call_operand.vmem [shape: f32[1,64], index: 12, kind: input, shape index: {}]
  %s13 = inlined_call_operand.vmem [shape: f32[32,32], index: 13, kind: input, shape index: {}]
  %s14 = inlined_call_operand.vmem [shape: bf16[32,32], index: 14, kind: input, shape index: {}]
  %s15 = inlined_call_operand.vmem [shape: f32[1,32], index: 15, kind: input, shape index: {}]
  %s16 = inlined_call_operand.vmem [shape: f32[1,32], index: 16, kind: input, shape index: {}]
  %s17 = inlined_call_operand.vmem [shape: f32[1,32], index: 17, kind: input, shape index: {}]
  %s18 = inlined_call_operand.hbm [shape: f32[8,32], index: 18, kind: output, shape index: {}]
  %s19 = sld [smem:[#allocation0]]
  $region90: #{tpu_custom_call.1} parent=0
    _
  %s21 = ssub.s32 1, %s19
  %s22 = scalar_select 0, %s21, %s19
  $region1: #{tpu_custom_call.1} parent=0
    #allocation2 [shape = 'u8[4096]{0}', space=vmem, size = 0x1000, scoped, tag = 'input window, operand 0, single buffered']
    #allocation3 [shape = 's32[1]{0}', space=sflag, size = 0x4, scoped, tag = 'scoped memory for tpu_custom_call.1']
    #allocation4 [shape = 's32[1]{0}', space=sflag, size = 0x4, scoped, tag = 'scoped memory for tpu_custom_call.1']
    #allocation5 [shape = 'u8[2048]{0}', space=vmem, size = 0x800, scoped, tag = 'input window, operand 4, single buffered']
    #allocation6 [shape = 's32[1]{0}', space=sflag, size = 0x4, scoped, tag = 'scoped memory for tpu_custom_call.1']
    #allocation7 [shape = 'u8[4096]{0}', space=vmem, size = 0x1000, scoped, tag = 'output window, operand 0, single buffered']
    %23 = vsyncpa [#allocation3], 0
    %24 = vsyncpa [#allocation6], 0
    %25 = vsyncpa [#allocation4], 0
    // Predicated region
    $region2: #{tpu_custom_call.1} parent=1 // pred_check
      _
    $region3: #{tpu_custom_call.1} parent=1 // pred_check_branch
      %27 = sbr.rel (0) target = $region5
    $region4: #{tpu_custom_call.1} parent=1 // pred_region
      %s29 = ssub.s32 128, 128
      %30 = vsyncadd [#allocation3], %s29
      %s32 = sshll.u32 [#allocation2], 4
      %s33 = int_to_ptr.vmem [resolvable:$true] %s32
      %35 = dma.hbm_to_vmem [thread:$0]  %s0, 128, %s33, [#allocation3]
    $region5: #{tpu_custom_call.1} parent=1 // pred_fallthru
      _
    // Predicated region
    $region6: #{tpu_custom_call.1} parent=1 // pred_check
      _
    $region7: #{tpu_custom_call.1} parent=1 // pred_check_branch
      %37 = sbr.rel (0) target = $region9
    $region8: #{tpu_custom_call.1} parent=1 // pred_region
      _
    $region9: #{tpu_custom_call.1} parent=1 // pred_fallthru
      _
    // Predicated region
    $region10: #{tpu_custom_call.1} parent=1 // pred_check
      _
    $region11: #{tpu_custom_call.1} parent=1 // pred_check_branch
      %39 = sbr.rel (0) target = $region13
    $region12: #{tpu_custom_call.1} parent=1 // pred_region
      _
    $region13: #{tpu_custom_call.1} parent=1 // pred_fallthru
      _
    // Predicated region
    $region14: #{tpu_custom_call.1} parent=1 // pred_check
      _
    $region15: #{tpu_custom_call.1} parent=1 // pred_check_branch
      %41 = sbr.rel (0) target = $region17
    $region16: #{tpu_custom_call.1} parent=1 // pred_region
      _
    $region17: #{tpu_custom_call.1} parent=1 // pred_fallthru
      _
    // Predicated region
    $region18: #{tpu_custom_call.1} parent=1 // pred_check
      _
    $region19: #{tpu_custom_call.1} parent=1 // pred_check_branch
      %43 = sbr.rel (0) target = $region21
    $region20: #{tpu_custom_call.1} parent=1 // pred_region
      %s45 = ssub.s32 64, 64
      %46 = vsyncadd [#allocation6], %s45
      %s48 = sshll.u32 [#allocation5], 4
      %s49 = int_to_ptr.vmem [resolvable:$true] %s48
      %51 = dma.hbm_to_vmem [thread:$0]  %s4, 64, %s49, [#allocation6]
    $region21: #{tpu_custom_call.1} parent=1 // pred_fallthru
      _
    // Predicated region
    $region22: #{tpu_custom_call.1} parent=1 // pred_check
      _
    $region23: #{tpu_custom_call.1} parent=1 // pred_check_branch
      %53 = sbr.rel (0) target = $region25
    $region24: #{tpu_custom_call.1} parent=1 // pred_region
      _
    $region25: #{tpu_custom_call.1} parent=1 // pred_fallthru
      _
    // Predicated region
    $region26: #{tpu_custom_call.1} parent=1 // pred_check
      _
    $region27: #{tpu_custom_call.1} parent=1 // pred_check_branch
      %55 = sbr.rel (0) target = $region29
    $region28: #{tpu_custom_call.1} parent=1 // pred_region
      _
    $region29: #{tpu_custom_call.1} parent=1 // pred_fallthru
      _
    // Predicated region
    $region30: #{tpu_custom_call.1} parent=1 // pred_check
      _
    $region31: #{tpu_custom_call.1} parent=1 // pred_check_branch
      %57 = sbr.rel (0) target = $region33
    $region32: #{tpu_custom_call.1} parent=1 // pred_region
      _
    $region33: #{tpu_custom_call.1} parent=1 // pred_fallthru
      _
    // Predicated region
    $region34: #{tpu_custom_call.1} parent=1 // pred_check
      _
    $region35: #{tpu_custom_call.1} parent=1 // pred_check_branch
      %59 = sbr.rel (0) target = $region37
    $region36: #{tpu_custom_call.1} parent=1 // pred_region
      _
    $region37: #{tpu_custom_call.1} parent=1 // pred_fallthru
      _
    // Predicated region
    $region38: #{tpu_custom_call.1} parent=1 // pred_check
      _
    $region39: #{tpu_custom_call.1} parent=1 // pred_check_branch
      %61 = sbr.rel (0) target = $region41
    $region40: #{tpu_custom_call.1} parent=1 // pred_region
      _
    $region41: #{tpu_custom_call.1} parent=1 // pred_fallthru
      _
    // Predicated region
    $region42: #{tpu_custom_call.1} parent=1 // pred_check
      _
    $region43: #{tpu_custom_call.1} parent=1 // pred_check_branch
      %63 = sbr.rel (0) target = $region45
    $region44: #{tpu_custom_call.1} parent=1 // pred_region
      _
    $region45: #{tpu_custom_call.1} parent=1 // pred_fallthru
      _
    // Predicated region
    $region46: #{tpu_custom_call.1} parent=1 // pred_check
      _
    $region47: #{tpu_custom_call.1} parent=1 // pred_check_branch
      %65 = sbr.rel (0) target = $region49
    $region48: #{tpu_custom_call.1} parent=1 // pred_region
      _
    $region49: #{tpu_custom_call.1} parent=1 // pred_fallthru
      _
    // Predicated region
    $region50: #{tpu_custom_call.1} parent=1 // pred_check
      _
    $region51: #{tpu_custom_call.1} parent=1 // pred_check_branch
      %67 = sbr.rel (0) target = $region53
    $region52: #{tpu_custom_call.1} parent=1 // pred_region
      _
    $region53: #{tpu_custom_call.1} parent=1 // pred_fallthru
      _
    // Predicated region
    $region54: #{tpu_custom_call.1} parent=1 // pred_check
      _
    $region55: #{tpu_custom_call.1} parent=1 // pred_check_branch
      %69 = sbr.rel (0) target = $region57
    $region56: #{tpu_custom_call.1} parent=1 // pred_region
      _
    $region57: #{tpu_custom_call.1} parent=1 // pred_fallthru
      _
    // Predicated region
    $region58: #{tpu_custom_call.1} parent=1 // pred_check
      _
    $region59: #{tpu_custom_call.1} parent=1 // pred_check_branch
      %71 = sbr.rel (0) target = $region61
    $region60: #{tpu_custom_call.1} parent=1 // pred_region
      _
    $region61: #{tpu_custom_call.1} parent=1 // pred_fallthru
      _
    // Predicated region
    $region62: #{tpu_custom_call.1} parent=1 // pred_check
      _
    $region63: #{tpu_custom_call.1} parent=1 // pred_check_branch
      %73 = sbr.rel (0) target = $region65
    $region64: #{tpu_custom_call.1} parent=1 // pred_region
      _
    $region65: #{tpu_custom_call.1} parent=1 // pred_fallthru
      _
    // Predicated region
    $region66: #{tpu_custom_call.1} parent=1 // pred_check
      _
    $region67: #{tpu_custom_call.1} parent=1 // pred_check_branch
      %75 = sbr.rel (0) target = $region69
    $region68: #{tpu_custom_call.1} parent=1 // pred_region
      _
    $region69: #{tpu_custom_call.1} parent=1 // pred_fallthru
      _
    // Predicated region
    $region70: #{tpu_custom_call.1} parent=1 // pred_check
      _
    $region71: #{tpu_custom_call.1} parent=1 // pred_check_branch
      %77 = sbr.rel (0) target = $region73
    $region72: #{tpu_custom_call.1} parent=1 // pred_region
      _
    $region73: #{tpu_custom_call.1} parent=1 // pred_fallthru
      _
    // Predicated region
    $region74: #{tpu_custom_call.1} parent=1 // pred_check
      _
    $region75: #{tpu_custom_call.1} parent=1 // pred_check_branch
      %79 = sbr.rel (0) target = $region77
    $region76: #{tpu_custom_call.1} parent=1 // pred_region
      %80 = dma.done [#allocation3], 128
    $region77: #{tpu_custom_call.1} parent=1 // pred_fallthru
      _
    // Predicated region
    $region78: #{tpu_custom_call.1} parent=1 // pred_check
      _
    $region79: #{tpu_custom_call.1} parent=1 // pred_check_branch
      %82 = sbr.rel (0) target = $region81
    $region80: #{tpu_custom_call.1} parent=1 // pred_region
      %83 = dma.done [#allocation6], 64
    $region81: #{tpu_custom_call.1} parent=1 // pred_fallthru
      _
    %v85 = vld [vmem:[#allocation2] sm:$0xff]
    %v86 = vpack.c.bf16 %v85, %v85
    %v87 = vld [vmem:[%s7] sm:$0xf]
    %v88 = vld [vmem:[%s8] sm:$0x1]
    %v90 = vlaneseq
    %v91 = vshrl.u32 %v90, 7
    %v92 = vsub.s32 0, %v91
    %v93 = vrot.slane %v88, %v92
    %vm95 = vcmask 64512
    %v97 = vsel %vm95, %v86, 0
    %vm99 = vcmask 1043456
    %v101 = vsel %vm99, %v87, 0
    %103 = vmatprep.subr.bf16.mxu0 0
    %104 = vmatpush1.bf16.msra.mxu0 %v101
    %105 = vmatprep.subr.bf16.mxu0 0
    %106 = vmatpush1.bf16.msra.mxu0 0
    %107 = vmatprep.subr.bf16.mxu0 0
    %108 = vmatpush1.bf16.msra.mxu0 0
    %109 = vmatprep.subr.bf16.mxu0 0
    %110 = vmatpush1.bf16.msra.mxu0 0
    %111 = vmatprep.subr.bf16.mxu0 0
    %112 = vmatpush1.bf16.msra.mxu0 0
    %113 = vmatprep.subr.bf16.mxu0 0
    %114 = vmatpush1.bf16.msra.mxu0 0
    %115 = vmatprep.subr.bf16.mxu0 0
    %116 = vmatpush1.bf16.msra.mxu0 0
    %117 = vmatprep.subr.bf16.mxu0 0
    %118 = vmatpush1.bf16.msra.mxu0 0
    %119 = vmatprep.subr.bf16.mxu0 0
    %120 = vmatpush1.bf16.msra.mxu0 0
    %121 = vmatprep.subr.bf16.mxu0 0
    %122 = vmatpush1.bf16.msra.mxu0 0
    %123 = vmatprep.subr.bf16.mxu0 0
    %124 = vmatpush1.bf16.msra.mxu0 0
    %125 = vmatprep.subr.bf16.mxu0 0
    %126 = vmatpush1.bf16.msra.mxu0 0
    %127 = vmatprep.subr.bf16.mxu0 0
    %128 = vmatpush1.bf16.msra.mxu0 0
    %129 = vmatprep.subr.bf16.mxu0 0
    %130 = vmatpush1.bf16.msra.mxu0 0
    %131 = vmatprep.subr.bf16.mxu0 0
    %132 = vmatpush1.bf16.msra.mxu0 0
    %133 = vmatprep.subr.bf16.mxu0 0
    %134 = vmatpush1.bf16.msra.mxu0 0
    %135 = vmatprep.mubr.bf16.mxu0 0
    %136 = vmatmul.mubr.bf16.gmra.mrb[0].mxu0 %v97
    %v137 = vpop.f32.mrb[0].mxu0
    %v138 = vadd.f32 %v93, %v137
    %v139 = vpop.f32.mrb[0].mxu0
    %v140 = vpop.f32.mrb[0].mxu0
    %v141 = vpop.f32.mrb[0].mxu0
    %142 = vdwg.mxu0
    %v143 = vmul.f32 %v138, 0.5
    %v144 = vmul.f32 %v138, 0.044715
    %v145 = vmul.f32 %v144, %v138
    %v146 = vmul.f32 %v145, %v138
    %v147 = vadd.f32 %v138, %v146
    %v148 = vmul.f32 %v147, 0.7978846
    %v149 = vtanh.pop %v148
    %v150 = vadd.f32 %v149, 1.0
    %v151 = vmul.f32 %v143, %v150
    %v152 = vpack.c.bf16 %v151, %v151
    %v153 = vld [vmem:[%s9] sm:$0xf]
    %v154 = vld [vmem:[%s9 + $0x4] sm:$0xf]
    %v155 = vld [vmem:[%s9 + $0x8] sm:$0xf]
    %v156 = vld [vmem:[%s9 + $0xc] sm:$0xf]
    %v157 = vld [vmem:[%s10] sm:$0x1]
    %v159 = vlaneseq
    %v160 = vshrl.u32 %v159, 7
    %v161 = vsub.s32 0, %v160
    %v162 = vrot.slane %v157, %v161
    %v168 = vunpack.c.l.b16 %v153
    %v169 = vunpack.c.l.b16 %v154
    %v170 = vunpack.c.l.b16 %v155
    %v171 = vunpack.c.l.b16 %v156
    %v172 = vpack.c.b16 %v169, %v168
    %v173 = vpack.c.b16 %v171, %v170
    %vm176 = vcmask 261120
    %v178 = vsel %vm176, %v152, 0
    %180 = vmatprep.subr.bf16.mxu0 0
    %181 = vmatpush1.bf16.msra.mxu0 %v172
    %182 = vmatprep.subr.bf16.mxu0 0
    %183 = vmatpush1.bf16.msra.mxu0 %v173
    %184 = vmatprep.subr.bf16.mxu0 0
    %185 = vmatpush1.bf16.msra.mxu0 0
    %186 = vmatprep.subr.bf16.mxu0 0
    %187 = vmatpush1.bf16.msra.mxu0 0
    %188 = vmatprep.subr.bf16.mxu0 0
    %189 = vmatpush1.bf16.msra.mxu0 0
    %190 = vmatprep.subr.bf16.mxu0 0
    %191 = vmatpush1.bf16.msra.mxu0 0
    %192 = vmatprep.subr.bf16.mxu0 0
    %193 = vmatpush1.bf16.msra.mxu0 0
    %194 = vmatprep.subr.bf16.mxu0 0
    %195 = vmatpush1.bf16.msra.mxu0 0
    %196 = vmatprep.subr.bf16.mxu0 0
    %197 = vmatpush1.bf16.msra.mxu0 0
    %198 = vmatprep.subr.bf16.mxu0 0
    %199 = vmatpush1.bf16.msra.mxu0 0
    %200 = vmatprep.subr.bf16.mxu0 0
    %201 = vmatpush1.bf16.msra.mxu0 0
    %202 = vmatprep.subr.bf16.mxu0 0
    %203 = vmatpush1.bf16.msra.mxu0 0
    %204 = vmatprep.subr.bf16.mxu0 0
    %205 = vmatpush1.bf16.msra.mxu0 0
    %206 = vmatprep.subr.bf16.mxu0 0
    %207 = vmatpush1.bf16.msra.mxu0 0
    %208 = vmatprep.subr.bf16.mxu0 0
    %209 = vmatpush1.bf16.msra.mxu0 0
    %210 = vmatprep.subr.bf16.mxu0 0
    %211 = vmatpush1.bf16.msra.mxu0 0
    %212 = vmatprep.mubr.bf16.mxu0 0
    %213 = vmatmul.mubr.bf16.gmra.mrb[0].mxu0 %v178
    %v214 = vpop.f32.mrb[0].mxu0
    %v215 = vadd.f32 %v162, %v214
    %v216 = vpop.f32.mrb[0].mxu0
    %v217 = vpop.f32.mrb[0].mxu0
    %v218 = vpop.f32.mrb[0].mxu0
    %219 = vdwg.mxu0
    %v220 = vmul.f32 %v215, 0.35355338
    %v221 = vld [vmem:[%s1] sm:$0xff]
    %v222 = vld [vmem:[%s1 + $0x8] sm:$0xff]
    %v223 = vld [vmem:[%s1 + $0x10] sm:$0xff]
    %v224 = vld [vmem:[%s1 + $0x18] sm:$0xff]
    %v225 = vld [vmem:[%s1 + $0x20] sm:$0xff]
    %v226 = vpack.c.bf16 %v222, %v221
    %v227 = vpack.c.bf16 %v224, %v223
    %v228 = vpack.c.bf16 %v225, %v225
    %v229 = vld [vmem:[#allocation5] sm:$0x7]
    %v230 = vld [vmem:[%s2] sm:$0xff]
    %v231 = vld [vmem:[%s2 + $0x8] sm:$0xff]
    %v232 = vld [vmem:[%s2 + $0x10] sm:$0xff]
    %v233 = vld [vmem:[%s2 + $0x18] sm:$0xff]
    %v234 = vld [vmem:[%s2 + $0x20] sm:$0xff]
    %v235 = vpack.c.bf16 %v231, %v230
    %v236 = vpack.c.bf16 %v233, %v232
    %v237 = vpack.c.bf16 %v234, %v234
    %v238 = vld [vmem:[%s5] sm:$0x3]
    %vm239 = vcmask 31744
    %v241 = vsel %vm239, %v235, 0
    %v244 = vsel %vm239, %v236, 0
    %v247 = vsel %vm239, %v237, 0
    %vm249 = vcmask 1041408
    %v251 = vsel %vm249, %v238, 0
    %253 = vmatprep.subr.bf16.mxu0 0
    %254 = vmatpush1.bf16.msra.mxu0 %v251
    %255 = vmatprep.subr.bf16.mxu0 0
    %256 = vmatpush1.bf16.msra.mxu0 0
    %257 = vmatprep.subr.bf16.mxu0 0
    %258 = vmatpush1.bf16.msra.mxu0 0
    %259 = vmatprep.subr.bf16.mxu0 0
    %260 = vmatpush1.bf16.msra.mxu0 0
    %261 = vmatprep.subr.bf16.mxu0 0
    %262 = vmatpush1.bf16.msra.mxu0 0
    %263 = vmatprep.subr.bf16.mxu0 0
    %264 = vmatpush1.bf16.msra.mxu0 0
    %265 = vmatprep.subr.bf16.mxu0 0
    %266 = vmatpush1.bf16.msra.mxu0 0
    %267 = vmatprep.subr.bf16.mxu0 0
    %268 = vmatpush1.bf16.msra.mxu0 0
    %269 = vmatprep.subr.bf16.mxu0 0
    %270 = vmatpush1.bf16.msra.mxu0 0
    %271 = vmatprep.subr.bf16.mxu0 0
    %272 = vmatpush1.bf16.msra.mxu0 0
    %273 = vmatprep.subr.bf16.mxu0 0
    %274 = vmatpush1.bf16.msra.mxu0 0
    %275 = vmatprep.subr.bf16.mxu0 0
    %276 = vmatpush1.bf16.msra.mxu0 0
    %277 = vmatprep.subr.bf16.mxu0 0
    %278 = vmatpush1.bf16.msra.mxu0 0
    %279 = vmatprep.subr.bf16.mxu0 0
    %280 = vmatpush1.bf16.msra.mxu0 0
    %281 = vmatprep.subr.bf16.mxu0 0
    %282 = vmatpush1.bf16.msra.mxu0 0
    %283 = vmatprep.subr.bf16.mxu0 0
    %284 = vmatpush1.bf16.msra.mxu0 0
    %285 = vmatprep.mubr.bf16.mxu0 0
    %286 = vmatmul.mubr.bf16.gmra.mrb[0].mxu0 %v241
    %v287 = vpop.f32.mrb[0].mxu0
    %v288 = vadd.f32 0.0, %v287
    %v289 = vpop.f32.mrb[0].mxu0
    %v290 = vpop.f32.mrb[0].mxu0
    %v291 = vadd.f32 0.0, %v290
    %v292 = vpop.f32.mrb[0].mxu0
    %293 = vmatprep.mubr.bf16.mxu0 0
    %294 = vmatmul.mubr.bf16.gmra.mrb[0].mxu0 %v244
    %v295 = vpop.f32.mrb[0].mxu0
    %v296 = vadd.f32 0.0, %v295
    %v297 = vpop.f32.mrb[0].mxu0
    %v298 = vpop.f32.mrb[0].mxu0
    %v299 = vadd.f32 0.0, %v298
    %v300 = vpop.f32.mrb[0].mxu0
    %301 = vmatprep.mubr.bf16.mxu0 0
    %302 = vmatmul.mubr.bf16.gmra.mrb[0].mxu0 %v247
    %v303 = vpop.f32.mrb[0].mxu0
    %v304 = vadd.f32 0.0, %v303
    %v305 = vpop.f32.mrb[0].mxu0
    %v306 = vpop.f32.mrb[0].mxu0
    %v307 = vpop.f32.mrb[0].mxu0
    %308 = vdwg.mxu0
    %vm309 = vcmask 48128
    %v311 = vsel %vm309, %v226, 0
    %v314 = vsel %vm309, %v227, 0
    %v317 = vsel %vm309, %v228, 0
    %vm319 = vcmask 1042432
    %v321 = vsel %vm319, %v229, 0
    %323 = vmatprep.subr.bf16.mxu0 0
    %324 = vmatpush1.bf16.msra.mxu0 %v321
    %325 = vmatprep.subr.bf16.mxu0 0
    %326 = vmatpush1.bf16.msra.mxu0 0
    %327 = vmatprep.subr.bf16.mxu0 0
    %328 = vmatpush1.bf16.msra.mxu0 0
    %329 = vmatprep.subr.bf16.mxu0 0
    %330 = vmatpush1.bf16.msra.mxu0 0
    %331 = vmatprep.subr.bf16.mxu0 0
    %332 = vmatpush1.bf16.msra.mxu0 0
    %333 = vmatprep.subr.bf16.mxu0 0
    %334 = vmatpush1.bf16.msra.mxu0 0
    %335 = vmatprep.subr.bf16.mxu0 0
    %336 = vmatpush1.bf16.msra.mxu0 0
    %337 = vmatprep.subr.bf16.mxu0 0
    %338 = vmatpush1.bf16.msra.mxu0 0
    %339 = vmatprep.subr.bf16.mxu0 0
    %340 = vmatpush1.bf16.msra.mxu0 0
    %341 = vmatprep.subr.bf16.mxu0 0
    %342 = vmatpush1.bf16.msra.mxu0 0
    %343 = vmatprep.subr.bf16.mxu0 0
    %344 = vmatpush1.bf16.msra.mxu0 0
    %345 = vmatprep.subr.bf16.mxu0 0
    %346 = vmatpush1.bf16.msra.mxu0 0
    %347 = vmatprep.subr.bf16.mxu0 0
    %348 = vmatpush1.bf16.msra.mxu0 0
    %349 = vmatprep.subr.bf16.mxu0 0
    %350 = vmatpush1.bf16.msra.mxu0 0
    %351 = vmatprep.subr.bf16.mxu0 0
    %352 = vmatpush1.bf16.msra.mxu0 0
    %353 = vmatprep.subr.bf16.mxu0 0
    %354 = vmatpush1.bf16.msra.mxu0 0
    %355 = vmatprep.mubr.bf16.mxu0 0
    %356 = vmatmul.mubr.bf16.gmra.mrb[0].mxu0 %v311
    %v357 = vpop.f32.mrb[0].mxu0
    %v358 = vadd.f32 %v288, %v357
    %v359 = vpop.f32.mrb[0].mxu0
    %v360 = vpop.f32.mrb[0].mxu0
    %v361 = vadd.f32 %v291, %v360
    %v362 = vpop.f32.mrb[0].mxu0
    %363 = vmatprep.mubr.bf16.mxu0 0
    %364 = vmatmul.mubr.bf16.gmra.mrb[0].mxu0 %v314
    %v365 = vpop.f32.mrb[0].mxu0
    %v366 = vadd.f32 %v296, %v365
    %v367 = vpop.f32.mrb[0].mxu0
    %v368 = vpop.f32.mrb[0].mxu0
    %v369 = vadd.f32 %v299, %v368
    %v370 = vpop.f32.mrb[0].mxu0
    %371 = vmatprep.mubr.bf16.mxu0 0
    %372 = vmatmul.mubr.bf16.gmra.mrb[0].mxu0 %v317
    %v373 = vpop.f32.mrb[0].mxu0
    %v374 = vadd.f32 %v304, %v373
    %v375 = vpop.f32.mrb[0].mxu0
    %v376 = vpop.f32.mrb[0].mxu0
    %v377 = vpop.f32.mrb[0].mxu0
    %378 = vdwg.mxu0
    %v379 = vld [vmem:[%s6] sm:$0x1]
    %v381 = vlaneseq
    %v382 = vshrl.u32 %v381, 7
    %v383 = vsub.s32 0, %v382
    %v384 = vrot.slane %v379, %v383
    %v386 = vadd.f32 %v358, %v384
    %v387 = vadd.f32 %v361, %v384
    %v388 = vadd.f32 %v366, %v384
    %v389 = vadd.f32 %v369, %v384
    %v390 = vadd.f32 %v374, %v384
    %v391 = vmul.f32 %v386, 0.5
    %v392 = vmul.f32 %v387, 0.5
    %v393 = vmul.f32 %v388, 0.5
    %v394 = vmul.f32 %v389, 0.5
    %v395 = vmul.f32 %v390, 0.5
    %v396 = vmul.f32 %v386, 0.044715
    %v397 = vmul.f32 %v387, 0.044715
    %v398 = vmul.f32 %v388, 0.044715
    %v399 = vmul.f32 %v389, 0.044715
    %v400 = vmul.f32 %v390, 0.044715
    %v401 = vmul.f32 %v396, %v386
    %v402 = vmul.f32 %v397, %v387
    %v403 = vmul.f32 %v398, %v388
    %v404 = vmul.f32 %v399, %v389
    %v405 = vmul.f32 %v400, %v390
    %v406 = vmul.f32 %v401, %v386
    %v407 = vmul.f32 %v402, %v387
    %v408 = vmul.f32 %v403, %v388
    %v409 = vmul.f32 %v404, %v389
    %v410 = vmul.f32 %v405, %v390
    %v411 = vadd.f32 %v386, %v406
    %v412 = vadd.f32 %v387, %v407
    %v413 = vadd.f32 %v388, %v408
    %v414 = vadd.f32 %v389, %v409
    %v415 = vadd.f32 %v390, %v410
    %v416 = vmul.f32 %v411, 0.7978846
    %v417 = vmul.f32 %v412, 0.7978846
    %v418 = vmul.f32 %v413, 0.7978846
    %v419 = vmul.f32 %v414, 0.7978846
    %v420 = vmul.f32 %v415, 0.7978846
    %v421 = vtanh.pop %v416
    %v422 = vtanh.pop %v417
    %v423 = vtanh.pop %v418
    %v424 = vtanh.pop %v419
    %v425 = vtanh.pop %v420
    %v426 = vadd.f32 %v421, 1.0
    %v427 = vadd.f32 %v422, 1.0
    %v428 = vadd.f32 %v423, 1.0
    %v429 = vadd.f32 %v424, 1.0
    %v430 = vadd.f32 %v425, 1.0
    %v431 = vmul.f32 %v391, %v426
    %v432 = vmul.f32 %v392, %v427
    %v433 = vmul.f32 %v393, %v428
    %v434 = vmul.f32 %v394, %v429
    %v435 = vmul.f32 %v395, %v430
    %v436 = vpack.c.bf16 %v432, %v431
    %v437 = vpack.c.bf16 %v434, %v433
    %v438 = vpack.c.bf16 %v435, %v435
    %v439 = vld [vmem:[%s11] sm:$0xf]
    %v440 = vld [vmem:[%s11 + $0x4] sm:$0xf]
    %v441 = vld [vmem:[%s11 + $0x8] sm:$0xf]
    %v442 = vld [vmem:[%s11 + $0xc] sm:$0xf]
    %v443 = vld [vmem:[%s12] sm:$0x1]
    %v445 = vlaneseq
    %v446 = vshrl.u32 %v445, 7
    %v447 = vsub.s32 0, %v446
    %v448 = vrot.slane %v443, %v447
    %v454 = vunpack.c.l.b16 %v439
    %v455 = vunpack.c.l.b16 %v440
    %v456 = vunpack.c.l.b16 %v441
    %v457 = vunpack.c.l.b16 %v442
    %v458 = vpack.c.b16 %v455, %v454
    %v459 = vpack.c.b16 %v457, %v456
    %v463 = vsel %vm176, %v436, 0
    %v466 = vsel %vm176, %v437, 0
    %v469 = vsel %vm176, %v438, 0
    %471 = vmatprep.subr.bf16.mxu0 0
    %472 = vmatpush1.bf16.msra.mxu0 %v458
    %473 = vmatprep.subr.bf16.mxu0 0
    %474 = vmatpush1.bf16.msra.mxu0 %v459
    %475 = vmatprep.subr.bf16.mxu0 0
    %476 = vmatpush1.bf16.msra.mxu0 0
    %477 = vmatprep.subr.bf16.mxu0 0
    %478 = vmatpush1.bf16.msra.mxu0 0
    %479 = vmatprep.subr.bf16.mxu0 0
    %480 = vmatpush1.bf16.msra.mxu0 0
    %481 = vmatprep.subr.bf16.mxu0 0
    %482 = vmatpush1.bf16.msra.mxu0 0
    %483 = vmatprep.subr.bf16.mxu0 0
    %484 = vmatpush1.bf16.msra.mxu0 0
    %485 = vmatprep.subr.bf16.mxu0 0
    %486 = vmatpush1.bf16.msra.mxu0 0
    %487 = vmatprep.subr.bf16.mxu0 0
    %488 = vmatpush1.bf16.msra.mxu0 0
    %489 = vmatprep.subr.bf16.mxu0 0
    %490 = vmatpush1.bf16.msra.mxu0 0
    %491 = vmatprep.subr.bf16.mxu0 0
    %492 = vmatpush1.bf16.msra.mxu0 0
    %493 = vmatprep.subr.bf16.mxu0 0
    %494 = vmatpush1.bf16.msra.mxu0 0
    %495 = vmatprep.subr.bf16.mxu0 0
    %496 = vmatpush1.bf16.msra.mxu0 0
    %497 = vmatprep.subr.bf16.mxu0 0
    %498 = vmatpush1.bf16.msra.mxu0 0
    %499 = vmatprep.subr.bf16.mxu0 0
    %500 = vmatpush1.bf16.msra.mxu0 0
    %501 = vmatprep.subr.bf16.mxu0 0
    %502 = vmatpush1.bf16.msra.mxu0 0
    %503 = vmatprep.mubr.bf16.mxu0 0
    %504 = vmatmul.mubr.bf16.gmra.mrb[0].mxu0 %v463
    %v505 = vpop.f32.mrb[0].mxu0
    %v506 = vadd.f32 %v448, %v505
    %v507 = vpop.f32.mrb[0].mxu0
    %v508 = vpop.f32.mrb[0].mxu0
    %v509 = vadd.f32 %v448, %v508
    %v510 = vpop.f32.mrb[0].mxu0
    %511 = vmatprep.mubr.bf16.mxu0 0
    %512 = vmatmul.mubr.bf16.gmra.mrb[0].mxu0 %v466
    %v513 = vpop.f32.mrb[0].mxu0
    %v514 = vadd.f32 %v448, %v513
    %v515 = vpop.f32.mrb[0].mxu0
    %v516 = vpop.f32.mrb[0].mxu0
    %v517 = vadd.f32 %v448, %v516
    %v518 = vpop.f32.mrb[0].mxu0
    %519 = vmatprep.mubr.bf16.mxu0 0
    %520 = vmatmul.mubr.bf16.gmra.mrb[0].mxu0 %v469
    %v521 = vpop.f32.mrb[0].mxu0
    %v522 = vadd.f32 %v448, %v521
    %v523 = vpop.f32.mrb[0].mxu0
    %v524 = vpop.f32.mrb[0].mxu0
    %v525 = vpop.f32.mrb[0].mxu0
    %526 = vdwg.mxu0
    %v527 = vmul.f32 %v220, %v506
    %v528 = vmul.f32 %v220, %v509
    %v529 = vmul.f32 %v220, %v514
    %v530 = vmul.f32 %v220, %v517
    %v531 = vmul.f32 %v220, %v522
    %v532 = vld [vmem:[%s13] sm:$0xff]
    %v533 = vld [vmem:[%s13 + $0x8] sm:$0xff]
    %v534 = vld [vmem:[%s13 + $0x10] sm:$0xff]
    %v535 = vld [vmem:[%s13 + $0x18] sm:$0xff]
    %v537 = vsel %vm176, %v527, 0
    %v540 = vsel %vm176, %v528, 0
    %v543 = vsel %vm176, %v529, 0
    %v546 = vsel %vm176, %v530, 0
    %v549 = vsel %vm176, %v531, 0
    %551 = vmatprep.subr.mxu0 0.0
    %552 = vmatpush1.msra.mxu0 %v532
    %553 = vmatprep.subr.mxu0 0.0
    %554 = vmatpush1.msra.mxu0 %v533
    %555 = vmatprep.subr.mxu0 0.0
    %556 = vmatpush1.msra.mxu0 %v534
    %557 = vmatprep.subr.mxu0 0.0
    %558 = vmatpush1.msra.mxu0 %v535
    %559 = vmatprep.subr.mxu0 0.0
    %560 = vmatpush1.msra.mxu0 0.0
    %561 = vmatprep.subr.mxu0 0.0
    %562 = vmatpush1.msra.mxu0 0.0
    %563 = vmatprep.subr.mxu0 0.0
    %564 = vmatpush1.msra.mxu0 0.0
    %565 = vmatprep.subr.mxu0 0.0
    %566 = vmatpush1.msra.mxu0 0.0
    %567 = vmatprep.subr.mxu0 0.0
    %568 = vmatpush1.msra.mxu0 0.0
    %569 = vmatprep.subr.mxu0 0.0
    %570 = vmatpush1.msra.mxu0 0.0
    %571 = vmatprep.subr.mxu0 0.0
    %572 = vmatpush1.msra.mxu0 0.0
    %573 = vmatprep.subr.mxu0 0.0
    %574 = vmatpush1.msra.mxu0 0.0
    %575 = vmatprep.subr.mxu0 0.0
    %576 = vmatpush1.msra.mxu0 0.0
    %577 = vmatprep.subr.mxu0 0.0
    %578 = vmatpush1.msra.mxu0 0.0
    %579 = vmatprep.subr.mxu0 0.0
    %580 = vmatpush1.msra.mxu0 0.0
    %581 = vmatprep.subr.mxu0 0.0
    %582 = vmatpush1.msra.mxu0 0.0
    %583 = vmatprep.subr.mxu0 0.0
    %584 = vmatpush1.msra.mxu0 0.0
    %585 = vmatprep.subr.mxu0 0.0
    %586 = vmatpush1.msra.mxu0 0.0
    %587 = vmatprep.subr.mxu0 0.0
    %588 = vmatpush1.msra.mxu0 0.0
    %589 = vmatprep.subr.mxu0 0.0
    %590 = vmatpush1.msra.mxu0 0.0
    %591 = vmatprep.subr.mxu0 0.0
    %592 = vmatpush1.msra.mxu0 0.0
    %593 = vmatprep.subr.mxu0 0.0
    %594 = vmatpush1.msra.mxu0 0.0
    %595 = vmatprep.subr.mxu0 0.0
    %596 = vmatpush1.msra.mxu0 0.0
    %597 = vmatprep.subr.mxu0 0.0
    %598 = vmatpush1.msra.mxu0 0.0
    %599 = vmatprep.subr.mxu0 0.0
    %600 = vmatpush1.msra.mxu0 0.0
    %601 = vmatprep.subr.mxu0 0.0
    %602 = vmatpush1.msra.mxu0 0.0
    %603 = vmatprep.subr.mxu0 0.0
    %604 = vmatpush1.msra.mxu0 0.0
    %605 = vmatprep.subr.mxu0 0.0
    %606 = vmatpush1.msra.mxu0 0.0
    %607 = vmatprep.subr.mxu0 0.0
    %608 = vmatpush1.msra.mxu0 0.0
    %609 = vmatprep.subr.mxu0 0.0
    %610 = vmatpush1.msra.mxu0 0.0
    %611 = vmatprep.subr.mxu0 0.0
    %612 = vmatpush1.msra.mxu0 0.0
    %613 = vmatprep.subr.mxu0 0.0
    %614 = vmatpush1.msra.mxu0 0.0
    %615 = vmatprep.mubr.f32.mxu0 0.0
    %616 = vmatmul.mubr.f32.gmra.mrb[0].mxu0 %v537
    %v617 = vpop.f32.mrb[0].mxu0
    %v618 = vadd.f32 0.0, %v617
    %v619 = vpop.f32.mrb[0].mxu0
    %620 = vmatprep.mubr.f32.mxu0 0.0
    %621 = vmatmul.mubr.f32.gmra.mrb[0].mxu0 %v540
    %v622 = vpop.f32.mrb[0].mxu0
    %v623 = vadd.f32 0.0, %v622
    %v624 = vpop.f32.mrb[0].mxu0
    %625 = vmatprep.mubr.f32.mxu0 0.0
    %626 = vmatmul.mubr.f32.gmra.mrb[0].mxu0 %v543
    %v627 = vpop.f32.mrb[0].mxu0
    %v628 = vadd.f32 0.0, %v627
    %v629 = vpop.f32.mrb[0].mxu0
    %630 = vmatprep.mubr.f32.mxu0 0.0
    %631 = vmatmul.mubr.f32.gmra.mrb[0].mxu0 %v546
    %v632 = vpop.f32.mrb[0].mxu0
    %v633 = vadd.f32 0.0, %v632
    %v634 = vpop.f32.mrb[0].mxu0
    %635 = vmatprep.mubr.f32.mxu0 0.0
    %636 = vmatmul.mubr.f32.gmra.mrb[0].mxu0 %v549
    %v637 = vpop.f32.mrb[0].mxu0
    %v638 = vadd.f32 0.0, %v637
    %v639 = vpop.f32.mrb[0].mxu0
    %640 = vdwg.mxu0
    %v641 = vld [vmem:[%s3] sm:$0xff]
    %v642 = vld [vmem:[%s3 + $0x8] sm:$0xff]
    %v643 = vld [vmem:[%s3 + $0x10] sm:$0xff]
    %v644 = vld [vmem:[%s3 + $0x18] sm:$0xff]
    %v645 = vld [vmem:[%s3 + $0x20] sm:$0xff]
    %647 = vset.pattern.permute.xlu0 0
    %648 = vperm.xlu0 %647, %v641
    %v649 = vpop.permute.xlu0 %648
    %652 = vset.pattern.permute.xlu0 0
    %653 = vperm.xlu0 %652, %v642
    %v654 = vpop.permute.xlu0 %653
    %657 = vset.pattern.permute.xlu0 0
    %658 = vperm.xlu0 %657, %v643
    %v659 = vpop.permute.xlu0 %658
    %662 = vset.pattern.permute.xlu0 0
    %663 = vperm.xlu0 %662, %v644
    %v664 = vpop.permute.xlu0 %663
    %667 = vset.pattern.permute.xlu0 0
    %668 = vperm.xlu0 %667, %v645
    %v669 = vpop.permute.xlu0 %668
    %v671 = vadd.f32 %v618, %v649
    %v672 = vadd.f32 %v623, %v654
    %v673 = vadd.f32 %v628, %v659
    %v674 = vadd.f32 %v633, %v664
    %v675 = vadd.f32 %v638, %v669
    %v676 = vsel %vm176, %v671, -inf
    %v677 = vsel %vm176, %v672, -inf
    %v678 = vsel %vm176, %v673, -inf
    %v679 = vsel %vm176, %v674, -inf
    %v680 = vsel %vm176, %v675, -inf
    %v681 = vmax.f32 %v676, %v680
    %v682 = vmax.f32 %v681, %v677
    %v683 = vmax.f32 %v678, %v679
    %v684 = vmax.f32 %v682, %v683
    %v685 = vsub.f32 %v671, %v684
    %v686 = vsub.f32 %v672, %v684
    %v687 = vsub.f32 %v673, %v684
    %v688 = vsub.f32 %v674, %v684
    %v689 = vsub.f32 %v675, %v684
    %v690 = vmul.f32 %v685, 1.442695
    %v691 = vpow.pop %v690
    %v692 = vmul.f32 %v686, 1.442695
    %v693 = vpow.pop %v692
    %v694 = vmul.f32 %v687, 1.442695
    %v695 = vpow.pop %v694
    %v696 = vmul.f32 %v688, 1.442695
    %v697 = vpow.pop %v696
    %v698 = vmul.f32 %v689, 1.442695
    %v699 = vpow.pop %v698
    %v700 = vsel %vm176, %v691, 0.0
    %v701 = vsel %vm176, %v693, 0.0
    %v702 = vadd.f32 %v700, %v701
    %v703 = vsel %vm176, %v695, 0.0
    %v704 = vadd.f32 %v702, %v703
    %v705 = vsel %vm176, %v697, 0.0
    %v706 = vadd.f32 %v704, %v705
    %v707 = vsel %vm176, %v699, 0.0
    %v708 = vadd.f32 %v706, %v707
    %714 = vrot.lane.b32.xlu0 %v506, 96
    %v715 = vpop.permute.xlu0 %714
    %716 = vrot.lane.b32.xlu0 %v509, 96
    %v717 = vpop.permute.xlu0 %716
    %718 = vrot.lane.b32.xlu0 %v514, 96
    %v719 = vpop.permute.xlu0 %718
    %720 = vrot.lane.b32.xlu0 %v517, 96
    %v721 = vpop.permute.xlu0 %720
    %722 = vrot.lane.b32.xlu0 %v522, 96
    %v723 = vpop.permute.xlu0 %722
    %v729 = vmul.f32 %v691, %v715
    %v730 = vmul.f32 %v693, %v717
    %v731 = vmul.f32 %v695, %v719
    %v732 = vmul.f32 %v697, %v721
    %v733 = vmul.f32 %v699, %v723
    %v734 = vsel %vm176, %v729, 0.0
    %v735 = vsel %vm176, %v730, 0.0
    %v736 = vadd.f32 %v734, %v735
    %v737 = vsel %vm176, %v731, 0.0
    %v738 = vadd.f32 %v736, %v737
    %v739 = vsel %vm176, %v732, 0.0
    %v740 = vadd.f32 %v738, %v739
    %v741 = vsel %vm176, %v733, 0.0
    %v742 = vadd.f32 %v740, %v741
    %v743 = vrcp.pop %v708
    %v744 = vmul.f32 %v742, %v743
    %v745 = vpack.c.bf16 %v744, %v744
    %v746 = vld [vmem:[%s14] sm:$0xf]
    %v747 = vld [vmem:[%s14 + $0x4] sm:$0xf]
    %v748 = vld [vmem:[%s14 + $0x8] sm:$0xf]
    %v749 = vld [vmem:[%s14 + $0xc] sm:$0xf]
    %v750 = vld [vmem:[%s15] sm:$0x1]
    %v752 = vlaneseq
    %v753 = vshrl.u32 %v752, 7
    %v754 = vsub.s32 0, %v753
    %v755 = vrot.slane %v750, %v754
    %v761 = vunpack.c.l.b16 %v746
    %v762 = vunpack.c.l.b16 %v747
    %v763 = vunpack.c.l.b16 %v748
    %v764 = vunpack.c.l.b16 %v749
    %v765 = vpack.c.b16 %v762, %v761
    %v766 = vpack.c.b16 %v764, %v763
    %v770 = vsel %vm176, %v745, 0
    %772 = vmatprep.subr.bf16.mxu0 0
    %773 = vmatpush1.bf16.msra.mxu0 %v765
    %774 = vmatprep.subr.bf16.mxu0 0
    %775 = vmatpush1.bf16.msra.mxu0 %v766
    %776 = vmatprep.subr.bf16.mxu0 0
    %777 = vmatpush1.bf16.msra.mxu0 0
    %778 = vmatprep.subr.bf16.mxu0 0
    %779 = vmatpush1.bf16.msra.mxu0 0
    %780 = vmatprep.subr.bf16.mxu0 0
    %781 = vmatpush1.bf16.msra.mxu0 0
    %782 = vmatprep.subr.bf16.mxu0 0
    %783 = vmatpush1.bf16.msra.mxu0 0
    %784 = vmatprep.subr.bf16.mxu0 0
    %785 = vmatpush1.bf16.msra.mxu0 0
    %786 = vmatprep.subr.bf16.mxu0 0
    %787 = vmatpush1.bf16.msra.mxu0 0
    %788 = vmatprep.subr.bf16.mxu0 0
    %789 = vmatpush1.bf16.msra.mxu0 0
    %790 = vmatprep.subr.bf16.mxu0 0
    %791 = vmatpush1.bf16.msra.mxu0 0
    %792 = vmatprep.subr.bf16.mxu0 0
    %793 = vmatpush1.bf16.msra.mxu0 0
    %794 = vmatprep.subr.bf16.mxu0 0
    %795 = vmatpush1.bf16.msra.mxu0 0
    %796 = vmatprep.subr.bf16.mxu0 0
    %797 = vmatpush1.bf16.msra.mxu0 0
    %798 = vmatprep.subr.bf16.mxu0 0
    %799 = vmatpush1.bf16.msra.mxu0 0
    %800 = vmatprep.subr.bf16.mxu0 0
    %801 = vmatpush1.bf16.msra.mxu0 0
    %802 = vmatprep.subr.bf16.mxu0 0
    %803 = vmatpush1.bf16.msra.mxu0 0
    %804 = vmatprep.mubr.bf16.mxu0 0
    %805 = vmatmul.mubr.bf16.gmra.mrb[0].mxu0 %v770
    %v806 = vpop.f32.mrb[0].mxu0
    %v807 = vadd.f32 %v755, %v806
    %v808 = vpop.f32.mrb[0].mxu0
    %v809 = vpop.f32.mrb[0].mxu0
    %v810 = vpop.f32.mrb[0].mxu0
    %811 = vdwg.mxu0
    %v812 = vsel %vm176, %v807, 0.0
    %813 = vadd.xlane.f32.xlu0 %v812
    %v814 = vpop.xlane.xlu0 %813
    %v815 = vrcp.pop 32.0
    %v816 = vmul.f32 %v814, %v815
    %v817 = vsub.f32 %v807, %v816
    %v818 = vmul.f32 %v817, %v817
    %v819 = vsel %vm176, %v818, 0.0
    %820 = vadd.xlane.f32.xlu0 %v819
    %v821 = vpop.xlane.xlu0 %820
    %v822 = vmul.f32 %v821, %v815
    %v823 = vadd.f32 %v822, 2.5e-06
    %v824 = vrsqrt.pop %v823
    %v825 = vmul.f32 %v817, %v824
    %v826 = vld [vmem:[%s16] sm:$0x1]
    %v828 = vlaneseq
    %v829 = vshrl.u32 %v828, 7
    %v830 = vsub.s32 0, %v829
    %v831 = vrot.slane %v826, %v830
    %v833 = vmul.f32 %v825, %v831
    %v834 = vld [vmem:[%s17] sm:$0x1]
    %v836 = vlaneseq
    %v837 = vshrl.u32 %v836, 7
    %v838 = vsub.s32 0, %v837
    %v839 = vrot.slane %v834, %v838
    %v841 = vadd.f32 %v833, %v839
    %842 = vst.msk [vmem:[#allocation7] sm:$0xff] %vm176, %v841
    // Predicated region
    $region82: #{tpu_custom_call.1} parent=1 // pred_check
      _
    $region83: #{tpu_custom_call.1} parent=1 // pred_check_branch
      %844 = sbr.rel (0) target = $region85
    $region84: #{tpu_custom_call.1} parent=1 // pred_region
      %s846 = ssub.s32 128, 128
      %847 = vsyncadd [#allocation4], %s846
      %s849 = sshll.u32 [#allocation7], 4
      %s850 = int_to_ptr.vmem [resolvable:$true] %s849
      %852 = dma.vmem_to_hbm [thread:$0]  %s850, 128, %s18, [#allocation4]
    $region85: #{tpu_custom_call.1} parent=1 // pred_fallthru
      _
    // Predicated region
    $region86: #{tpu_custom_call.1} parent=1 // pred_check
      _
    $region87: #{tpu_custom_call.1} parent=1 // pred_check_branch
      %854 = sbr.rel (0) target = $region89
    $region88: #{tpu_custom_call.1} parent=1 // pred_region
      %855 = dma.done [#allocation4], 128
    $region89: #{tpu_custom_call.1} parent=1 // pred_fallthru
      _
    %856 = vsyncpa [#allocation3], 1
    %857 = vsyncpa [#allocation6], 1
    %858 = vsyncpa [#allocation4], 1

</llo_original>
